<compile_context>
chip_gen: v5e
topology: v5e:2x2
jax: 0.10.0
libtpu: 0.0.40
codegen_flags: <defaults>
</compile_context>

<pallas_src>
import functools

import jax
import jax.numpy as jnp
import numpy as np
from jax import lax
from jax.experimental import pallas as pl
from jax.experimental.pallas import tpu as pltpu


def _round_up(x, m):
    return ((x + m - 1) // m) * m


def _pick_lane_tile(L, bytes_per_col, batch, budget_bytes=3 << 20):
    """Largest lane-dense (multiple of 128) L tile whose per-step blocks fit a
    conservative VMEM budget; prefers an exact divisor of L, otherwise uses a
    cdiv grid with a (dropped) partial last tile.  Also keeps >= 2 parallel
    grid steps so both v7x TensorCores get work."""
    if L <= 128:
        return L
    cap = max(128, min(512, (budget_bytes // max(bytes_per_col, 1)) // 128 * 128))
    cap = min(cap, (L // 128) * 128)
    tn = None
    for c in (512, 384, 256, 128):
        if c <= cap and L % c == 0:
            tn = c
            break
    if tn is None:
        tn = cap
    if batch * pl.cdiv(L, tn) < 2 and tn > 128:
        tn = max(128, (tn // 2) // 128 * 128)
    return tn


# ----------------------------------------------------------------------------
# Kernel 1: fused q/k 1x1 Conv1d with split image/text, stacked q/k weights
#   [q; k] = [Wq_img; Wk_img] @ image + [Wq_txt; Wk_txt] @ text + [bq; bk]
# ----------------------------------------------------------------------------
def _qk_conv_kernel(img_ref, txt_ref, w_img_ref, w_txt_ref, b_ref,
                    q_ref, k_ref, *, cout):
    img = img_ref[0].astype(jnp.bfloat16)            # (C, tn)
    txt = txt_ref[0].astype(jnp.bfloat16)            # (C, tn)
    acc = jnp.dot(w_img_ref[...], img, preferred_element_type=jnp.float32)
    acc = acc + jnp.dot(w_txt_ref[...], txt, preferred_element_type=jnp.float32)
    acc = acc + b_ref[...]                           # (2*cout, tn) f32
    q_ref[0] = acc[:cout].astype(q_ref.dtype)        # rows [:cout]  -> conv_q
    k_ref[0] = acc[cout:].astype(k_ref.dtype)        # rows [cout:] -> conv_k


def qk_conv(text, image, wq, bq, wk, bk, out_dtype=jnp.bfloat16):
    """text/image: (B, C, L) f32; wq/wk: (Cout, 2C); bq/bk: (Cout,).
    Returns (q, k), each (B, Cout, L) in `out_dtype` (bf16 by default)."""
    B, C, L = text.shape
    Cout = wq.shape[0]

    # torch.cat((image, text), dim=1): weight cols [:C] hit image, [C:] hit
    # text.  Stack q over k row-wise so the kernel does 2 dots instead of 4.
    # Weights are cast to bf16 once, outside the kernel.
    w_img = jnp.concatenate([wq[:, :C], wk[:, :C]], axis=0).astype(jnp.bfloat16)
    w_txt = jnp.concatenate([wq[:, C:], wk[:, C:]], axis=0).astype(jnp.bfloat16)
    bias = jnp.concatenate([bq, bk], axis=0).reshape(2 * Cout, 1).astype(jnp.float32)

    bytes_per_col = 4 * 2 * C + 2 * 2 * Cout          # f32 img+txt in, bf16 q+k out
    tn = _pick_lane_tile(L, bytes_per_col, B)
    grid = (B, pl.cdiv(L, tn))

    x_spec = pl.BlockSpec((1, C, tn), lambda b, l: (b, 0, l))
    w_spec = pl.BlockSpec((2 * Cout, C), lambda b, l: (0, 0))
    b_spec = pl.BlockSpec((2 * Cout, 1), lambda b, l: (0, 0))
    o_spec = pl.BlockSpec((1, Cout, tn), lambda b, l: (b, 0, l))

    cost = pl.CostEstimate(
        flops=8 * B * Cout * C * L,
        transcendentals=0,
        bytes_accessed=(2 * B * C * L * 4          # image + text reads (f32)
                        + 4 * Cout * C * 2         # stacked weights (bf16)
                        + 2 * B * Cout * L * 2),   # q + k writes (bf16)
    )

    q, k = pl.pallas_call(
        functools.partial(_qk_conv_kernel, cout=Cout),
        out_shape=[jax.ShapeDtypeStruct((B, Cout, L), out_dtype),
                   jax.ShapeDtypeStruct((B, Cout, L), out_dtype)],
        grid_spec=pltpu.PrefetchScalarGridSpec(
            num_scalar_prefetch=0,
            grid=grid,
            in_specs=[x_spec, x_spec, w_spec, w_spec, b_spec],
            out_specs=[o_spec, o_spec],
        ),
        compiler_params=pltpu.CompilerParams(
            dimension_semantics=("parallel", "parallel")),
        cost_estimate=cost,
    )(image, text, w_img, w_txt, bias)
    return q, k


# ----------------------------------------------------------------------------
# Kernel 2: attention hot path, tiled over the query axis.
#   scores = q @ k^T ; attn = softmax(scores, -1)
#   out    = attn^T @ (text + image)   (contracts over the QUERY index, so the
#                                       output accumulates over q tiles)
# ----------------------------------------------------------------------------
def _make_attn_kernel(S, tq):
    n_q = pl.cdiv(S, tq)
    needs_mask = (n_q * tq != S)

    def kernel(q_ref, k_ref, t_ref, i_ref, o_ref, acc_ref):
        qi = pl.program_id(1)

        @pl.when(qi == 0)
        def _():
            acc_ref[...] = jnp.zeros_like(acc_ref)

        q = q_ref[0]                       # (tq, D) bf16
        k = k_ref[0]                       # (S, D) bf16, resident across q tiles
        # scores[j, i] = sum_d q[j, d] * k[i, d]     -> (tq, S), f32 accumulate
        scores = lax.dot_general(q, k, (((1,), (1,)), ((), ())),
                                 preferred_element_type=jnp.float32)
        v = t_ref[0] + i_ref[0]            # (tq, D) f32 value mixing

        if needs_mask:
            row = qi * tq + lax.broadcasted_iota(jnp.int32, (tq, 1), 0)
            valid = row < S
            scores = jnp.where(valid, scores, 0.0)   # keep padded rows finite
            v = jnp.where(valid, v, 0.0)             # padded value rows -> 0

        # Exact softmax in f32.
        # TODO(synk): pl.reciprocal(denom, approx=True) moves the divide to the
        #             EUP slot at ~1e-3 relative error; keep exact by default.
        m = jnp.max(scores, axis=-1, keepdims=True)
        e = jnp.exp(scores - m)
        p = e / jnp.sum(e, axis=-1, keepdims=True)

        if needs_mask:
            p = jnp.where(valid, p, 0.0)             # padded queries contribute 0

        # out[i, d] += sum_{j in q tile} p[j, i] * v[j, d]
        # TODO(synk): check the Mosaic dump for a per-step vxpose of p here;
        #             if present, restructure the contraction.
        contrib = lax.dot_general(p.astype(jnp.bfloat16), v.astype(jnp.bfloat16),
                                  (((0,), (0,)), ((), ())),
                                  preferred_element_type=jnp.float32)  # (S, D)
        acc_ref[...] += contrib

        @pl.when(qi == n_q - 1)
        def _():
            o_ref[0] = acc_ref[...].astype(o_ref.dtype)   # single lane-dense store

    return kernel


def vmca_attention(q, k, text_r, image_r, tq=None):
    """q, k: (B, S, D) bf16; text_r, image_r: (B, S, D) f32 -> (B, S, D) f32."""
    B, S, D = q.shape
    if tq is None:
        if S <= 128:
            tq = S
        else:
            tq = _round_up(pl.cdiv(S, pl.cdiv(S, 128)), 8)   # e.g. S=197 -> 104
    else:
        tq = min(S, _round_up(max(int(tq), 8), 8))           # sublane-legal tile
    n_q = pl.cdiv(S, tq)

    q_spec = pl.BlockSpec((1, tq, D), lambda b, i: (b, i, 0))     # rides the q tile
    full_spec = pl.BlockSpec((1, S, D), lambda b, i: (b, 0, 0))   # resident across q

    cost = pl.CostEstimate(
        flops=4 * B * S * S * D,
        transcendentals=B * S * S,
        bytes_accessed=B * S * D * (2 + 2 + 4 + 4 + 4),  # q,k bf16 + text,image,out f32
    )

    return pl.pallas_call(
        _make_attn_kernel(S, tq),
        out_shape=jax.ShapeDtypeStruct((B, S, D), jnp.float32),
        grid_spec=pltpu.PrefetchScalarGridSpec(
            num_scalar_prefetch=0,
            grid=(B, n_q),
            in_specs=[q_spec, full_spec, q_spec, q_spec],
            out_specs=full_spec,
            scratch_shapes=[pltpu.VMEM((S, D), jnp.float32)],   # f32 accumulator
        ),
        compiler_params=pltpu.CompilerParams(
            dimension_semantics=("parallel", "arbitrary")),
        cost_estimate=cost,
    )(q, k, text_r, image_r)


# ----------------------------------------------------------------------------
# Module wrapper
# ----------------------------------------------------------------------------
def init_params(key, input_size):
    """Conv1d(2*C, C, kernel_size=1) weights, PyTorch-like uniform init."""
    c_in = 2 * input_size
    bound = 1.0 / np.sqrt(c_in)
    ks = jax.random.split(key, 6)

    def u(k, shape):
        return jax.random.uniform(k, shape, jnp.float32, -bound, bound)

    return {
        "conv_k_w": u(ks[0], (input_size, c_in)),
        "conv_k_b": u(ks[1], (input_size,)),
        "conv_q_w": u(ks[2], (input_size, c_in)),
        "conv_q_b": u(ks[3], (input_size,)),
        # conv_final exists in the PyTorch __init__ but is unused in forward().
        "conv_final_w": u(ks[4], (input_size, c_in)),
        "conv_final_b": u(ks[5], (input_size,)),
    }


def value_mixed_cross_attention(params, text, image, seq, dim, tq=None):
    """text, image: (B, C, L) with C * L == seq * dim.  Returns (B, seq, dim)."""
    B, C, L = text.shape
    assert C * L == seq * dim, "conv output must reshape to (seq, dim)"

    q, k = qk_conv(text, image,
                   params["conv_q_w"], params["conv_q_b"],
                   params["conv_k_w"], params["conv_k_b"])

    q = q.reshape(B, seq, dim)          # bf16, half the reshape traffic
    k = k.reshape(B, seq, dim)
    text_r = text.reshape(B, seq, dim)  # stay f32: casting here would ADD traffic
    image_r = image.reshape(B, seq, dim)

    return vmca_attention(q, k, text_r, image_r, tq=tq)


# ----------------------------------------------------------------------------
# Pure-JAX references (for correctness checks)
# ----------------------------------------------------------------------------
def _reference(params, text, image, seq, dim, bf16_policy):
    """Plain-JAX forward.  With bf16_policy=True it mirrors the kernel's bf16
    storage / f32 accumulation policy (so only summation order differs from
    the Pallas kernels); with False it is the exact f32 module forward."""
    B = text.shape[0]
    hi = jax.lax.Precision.HIGHEST
    store = jnp.bfloat16 if bf16_policy else jnp.float32

    cat = jnp.concatenate((image, text), axis=1).astype(store)
    wq = params["conv_q_w"].astype(store)
    wk = params["conv_k_w"].astype(store)
    q = jnp.einsum("oc,bcl->bol", wq, cat, precision=hi,
                   preferred_element_type=jnp.float32) + params["conv_q_b"][None, :, None]
    k = jnp.einsum("oc,bcl->bol", wk, cat, precision=hi,
                   preferred_element_type=jnp.float32) + params["conv_k_b"][None, :, None]
    q = q.astype(store).reshape(B, seq, dim)
    k = k.astype(store).reshape(B, seq, dim)

    scores = jnp.einsum("bqd,bkd->bqk", q, k, precision=hi,
                        preferred_element_type=jnp.float32)
    attn = jax.nn.softmax(scores, axis=-1)

    v = (text.reshape(B, seq, dim) + image.reshape(B, seq, dim)).astype(store)
    out = jnp.einsum("bji,bjd->bid", attn.astype(store), v, precision=hi,
                     preferred_element_type=jnp.float32)
    return out


def _run_case(seed, B, C, L, seq, dim, tq=None):
    key = jax.random.PRNGKey(seed)
    kp, kt, ki = jax.random.split(key, 3)
    params = init_params(kp, C)
    text = jax.random.normal(kt, (B, C, L), jnp.float32)
    image = jax.random.normal(ki, (B, C, L), jnp.float32)

    out = jax.block_until_ready(
        value_mixed_cross_attention(params, text, image, seq, dim, tq=tq))

    # Tight check vs a reference that mirrors the kernel's bf16 storage policy
    # (differences are only accumulation order / MXU-vs-XLA rounding).
    ref_bf16 = jax.block_until_ready(
        _reference(params, text, image, seq, dim, bf16_policy=True))
    np.testing.assert_allclose(np.asarray(out), np.asarray(ref_bf16),
                               rtol=1e-2, atol=1e-2)

    # Loose sanity check vs the exact-f32 module semantics (bounds the cost of
    # the bf16 q/k storage optimization).
    ref_f32 = jax.block_until_ready(
        _reference(params, text, image, seq, dim, bf16_policy=False))
    np.testing.assert_allclose(np.asarray(out), np.asarray(ref_f32),
                               rtol=1e-1, atol=1e-1)


if __name__ == "__main__":
    # Small shapes consistent with the module: channel dim C, spatial length L,
    # and C*L == seq*dim (the original hard-codes C=768, L=197, seq=197, dim=768).
    # 1) base case: single q tile, single L tile
    _run_case(seed=0, B=2, C=16, L=16, seq=8, dim=32)
    # 2) partial conv L tile (L=200 -> tn=128, dropped tail) + masked q-tile
    #    accumulation path (S=25, tq=16)
    _run_case(seed=1, B=1, C=24, L=200, seq=25, dim=192, tq=16)
    # 3) lane-dense conv L tiling (L=768 -> tn=384, 2x2 parallel grid)
    _run_case(seed=2, B=2, C=8, L=768, seq=16, dim=384)

    print("KERNEL_OK")
</pallas_src>

<mosaic_0001>
module attributes {stable_mosaic.version = 11 : i64} {
  func.func @_qk_conv_kernel(%arg0: i32, %arg1: i32, %arg2: memref<1x16x16xf32, #tpu.memory_space<vmem>>, %arg3: memref<1x16x16xf32, #tpu.memory_space<vmem>>, %arg4: memref<32x16xbf16, #tpu.memory_space<vmem>>, %arg5: memref<32x16xbf16, #tpu.memory_space<vmem>>, %arg6: memref<32x1xf32, #tpu.memory_space<vmem>>, %arg7: memref<1x16x16xbf16, #tpu.memory_space<vmem>>, %arg8: memref<1x16x16xbf16, #tpu.memory_space<vmem>>) attributes {dimension_semantics = [#tpu.dimension_semantics<parallel>, #tpu.dimension_semantics<parallel>], iteration_bounds = array<i64: 2, 1>, scalar_prefetch = 0 : i64, scratch_operands = 0 : i64, tpu.core_type = #tpu.core_type<tc>, window_params = [{transform_indices = @transform_0, window_bounds = array<i64: 1, 16, 16>}, {transform_indices = @transform_1, window_bounds = array<i64: 1, 16, 16>}, {pipeline_mode = #tpu.pipeline_mode<synchronous>, transform_indices = @transform_2, window_bounds = array<i64: 32, 16>}, {pipeline_mode = #tpu.pipeline_mode<synchronous>, transform_indices = @transform_3, window_bounds = array<i64: 32, 16>}, {pipeline_mode = #tpu.pipeline_mode<synchronous>, transform_indices = @transform_4, window_bounds = array<i64: 32, 1>}, {transform_indices = @transform_5, window_bounds = array<i64: 1, 16, 16>}, {transform_indices = @transform_6, window_bounds = array<i64: 1, 16, 16>}]} {
    %c0 = arith.constant 0 : index
    %c0_0 = arith.constant 0 : index
    %c0_1 = arith.constant 0 : index
    %0 = vector.load %arg2[%c0, %c0_0, %c0_1] : memref<1x16x16xf32, #tpu.memory_space<vmem>>, vector<1x16x16xf32>
    %1 = vector.shape_cast %0 : vector<1x16x16xf32> to vector<16x16xf32>
    %2 = arith.truncf %1 : vector<16x16xf32> to vector<16x16xbf16>
    %c0_2 = arith.constant 0 : index
    %c0_3 = arith.constant 0 : index
    %c0_4 = arith.constant 0 : index
    %3 = vector.load %arg3[%c0_2, %c0_3, %c0_4] : memref<1x16x16xf32, #tpu.memory_space<vmem>>, vector<1x16x16xf32>
    %4 = vector.shape_cast %3 : vector<1x16x16xf32> to vector<16x16xf32>
    %5 = arith.truncf %4 : vector<16x16xf32> to vector<16x16xbf16>
    %c0_5 = arith.constant 0 : index
    %c0_6 = arith.constant 0 : index
    %6 = vector.load %arg4[%c0_5, %c0_6] : memref<32x16xbf16, #tpu.memory_space<vmem>>, vector<32x16xbf16>
    %cst = arith.constant dense<0.000000e+00> : vector<32x16xf32>
    %7 = tpu.matmul %6, %2, %cst {dimension_numbers = #tpu.dot_dimension_numbers<[1], [0], [0], [1], [0, 0, 1, 1], [], []>} : vector<32x16xbf16>, vector<16x16xbf16>, vector<32x16xf32> -> vector<32x16xf32>
    %c0_7 = arith.constant 0 : index
    %c0_8 = arith.constant 0 : index
    %8 = vector.load %arg5[%c0_7, %c0_8] : memref<32x16xbf16, #tpu.memory_space<vmem>>, vector<32x16xbf16>
    %cst_9 = arith.constant dense<0.000000e+00> : vector<32x16xf32>
    %9 = tpu.matmul %8, %5, %cst_9 {dimension_numbers = #tpu.dot_dimension_numbers<[1], [0], [0], [1], [0, 0, 1, 1], [], []>} : vector<32x16xbf16>, vector<16x16xbf16>, vector<32x16xf32> -> vector<32x16xf32>
    %10 = arith.addf %7, %9 : vector<32x16xf32>
    %c0_10 = arith.constant 0 : index
    %c0_11 = arith.constant 0 : index
    %11 = vector.load %arg6[%c0_10, %c0_11] : memref<32x1xf32, #tpu.memory_space<vmem>>, vector<32x1xf32>
    %12 = vector.broadcast %11 : vector<32x1xf32> to vector<32x16xf32>
    %13 = arith.addf %10, %12 : vector<32x16xf32>
    %14 = vector.extract_strided_slice %13 {offsets = [0, 0], sizes = [16, 16], strides = [1, 1]} : vector<32x16xf32> to vector<16x16xf32>
    %15 = arith.truncf %14 : vector<16x16xf32> to vector<16x16xbf16>
    %c0_12 = arith.constant 0 : index
    %c0_13 = arith.constant 0 : index
    %c0_14 = arith.constant 0 : index
    %16 = vector.load %arg7[%c0_12, %c0_13, %c0_14] : memref<1x16x16xbf16, #tpu.memory_space<vmem>>, vector<1x16x16xbf16>
    %17 = vector.shape_cast %16 : vector<1x16x16xbf16> to vector<16x16xbf16>
    %18 = vector.shape_cast %15 : vector<16x16xbf16> to vector<1x16x16xbf16>
    tpu.vector_store %arg7[%c0_12, %c0_13, %c0_14], %18 {strides = array<i32>} : memref<1x16x16xbf16, #tpu.memory_space<vmem>>, vector<1x16x16xbf16>,
    %19 = vector.extract_strided_slice %13 {offsets = [16, 0], sizes = [16, 16], strides = [1, 1]} : vector<32x16xf32> to vector<16x16xf32>
    %20 = arith.truncf %19 : vector<16x16xf32> to vector<16x16xbf16>
    %c0_15 = arith.constant 0 : index
    %c0_16 = arith.constant 0 : index
    %c0_17 = arith.constant 0 : index
    %21 = vector.load %arg8[%c0_15, %c0_16, %c0_17] : memref<1x16x16xbf16, #tpu.memory_space<vmem>>, vector<1x16x16xbf16>
    %22 = vector.shape_cast %21 : vector<1x16x16xbf16> to vector<16x16xbf16>
    %23 = vector.shape_cast %20 : vector<16x16xbf16> to vector<1x16x16xbf16>
    tpu.vector_store %arg8[%c0_15, %c0_16, %c0_17], %23 {strides = array<i32>} : memref<1x16x16xbf16, #tpu.memory_space<vmem>>, vector<1x16x16xbf16>,
    return
  }
  func.func @transform_0(%arg0: i32, %arg1: i32) -> (i32, i32, i32) {
    %c0_i32 = arith.constant 0 : i32
    %c0_i32_0 = arith.constant 0 : i32
    return %arg0, %c0_i32, %arg1 : i32, i32, i32
  }
  func.func @transform_1(%arg0: i32, %arg1: i32) -> (i32, i32, i32) {
    %c0_i32 = arith.constant 0 : i32
    %c0_i32_0 = arith.constant 0 : i32
    return %arg0, %c0_i32, %arg1 : i32, i32, i32
  }
  func.func @transform_2(%arg0: i32, %arg1: i32) -> (i32, i32) {
    %c0_i32 = arith.constant 0 : i32
    %c0_i32_0 = arith.constant 0 : i32
    %c0_i32_1 = arith.constant 0 : i32
    return %c0_i32, %c0_i32_0 : i32, i32
  }
  func.func @transform_3(%arg0: i32, %arg1: i32) -> (i32, i32) {
    %c0_i32 = arith.constant 0 : i32
    %c0_i32_0 = arith.constant 0 : i32
    %c0_i32_1 = arith.constant 0 : i32
    return %c0_i32, %c0_i32_0 : i32, i32
  }
  func.func @transform_4(%arg0: i32, %arg1: i32) -> (i32, i32) {
    %c0_i32 = arith.constant 0 : i32
    %c0_i32_0 = arith.constant 0 : i32
    %c0_i32_1 = arith.constant 0 : i32
    return %c0_i32, %c0_i32_0 : i32, i32
  }
  func.func @transform_5(%arg0: i32, %arg1: i32) -> (i32, i32, i32) {
    %c0_i32 = arith.constant 0 : i32
    %c0_i32_0 = arith.constant 0 : i32
    return %arg0, %c0_i32, %arg1 : i32, i32, i32
  }
  func.func @transform_6(%arg0: i32, %arg1: i32) -> (i32, i32, i32) {
    %c0_i32 = arith.constant 0 : i32
    %c0_i32_0 = arith.constant 0 : i32
    return %arg0, %c0_i32, %arg1 : i32, i32, i32
  }
}

</mosaic_0001>

<llo_original>
// kernel: tpu_custom_call.1
$region0: #{tpu_custom_call.1}
  #allocation0 [shape = 'u32[]', space=smem, size = 0x4, offset = 0x4, fixed_abs, tag = 'smem constant byte address 0x4 - core index']
  #allocation1 [shape = 'u32[72,128]{1,0:T(1,128)}', space=vmem, size = 0x9000, scoped, tag = 'internal scratch']
  %s0 = inlined_call_operand.vmem [shape: f32[2,16,16], index: 0, kind: input, shape index: {}]
  %s1 = inlined_call_operand.vmem [shape: f32[2,16,16], index: 1, kind: input, shape index: {}]
  %s2 = inlined_call_operand.vmem [shape: bf16[32,16], index: 2, kind: input, shape index: {}]
  %s3 = inlined_call_operand.vmem [shape: bf16[32,16], index: 3, kind: input, shape index: {}]
  %s4 = inlined_call_operand.vmem [shape: f32[32,1], index: 4, kind: input, shape index: {}]
  %s5 = inlined_call_operand.hbm [shape: bf16[2,16,16], index: 5, kind: output, shape index: {0}]
  %s6 = inlined_call_operand.hbm [shape: bf16[2,16,16], index: 6, kind: output, shape index: {1}]
  %7 = xla_tuple %s5, %s6
  %s8 = sld [smem:[#allocation0]]
  $region61: #{tpu_custom_call.1} parent=0
    _
  %s10 = ssub.s32 1, %s8
  %s11 = scalar_select 0, %s10, %s8
  $region1: #{tpu_custom_call.1} parent=0
    #allocation2 [shape = 'u8[8192]{0}', space=vmem, size = 0x2000, scoped, tag = 'output window, operand 0']
    #allocation3 [shape = 's32[2]{0}', space=sflag, size = 0x8, scoped, tag = 'scoped memory for tpu_custom_call.1']
    #allocation4 [shape = 'u8[8192]{0}', space=vmem, size = 0x2000, scoped, tag = 'output window, operand 1']
    #allocation5 [shape = 's32[2]{0}', space=sflag, size = 0x8, scoped, tag = 'scoped memory for tpu_custom_call.1']
    %12 = vsyncpa [#allocation3], 0
    %s13 = scalar_lea.sflag [#allocation3], 1
    %14 = vsyncpa %s13, 0
    %15 = vsyncpa [#allocation5], 0
    %s16 = scalar_lea.sflag [#allocation5], 1
    %17 = vsyncpa %s16, 0
    loop: start=0, step=1, limit=4
    $region2: #{tpu_custom_call.1} parent=1 // loop_pre_header
      _
    $region3: #{tpu_custom_call.1} parent=1 // loop_header
      %s19 = sphi 0, %s23
      %p20 = scmp.ge.s32.totalorder %s19, 4
      %s26 = sphi 0, %s38
      %s27 = sphi 0, %s34
      %s28 = sphi 0, %s26
      %s29 = sphi 0, %s27
      %s30 = sphi 0, %s28
      %s31 = sphi 0, %s29
      %s43 = sphi 0, %s45
      %s46 = sphi 0, %s43
      %s47 = sphi 0, %s46
      %s63 = sphi 0, %s47
      %s71 = sphi 0, %s73
      %s74 = sphi 0, %s71
      %s75 = sphi 0, %s74
      %s91 = sphi 0, %s75
      %s95 = sphi 0, %s95
      %s97 = sphi 0, %s95
      %s98 = sphi 0, %s97
      %s112 = sphi 0, %s98
      %s116 = sphi 0, %s116
      %s118 = sphi 0, %s116
      %s119 = sphi 0, %s118
      %s133 = sphi 0, %s119
      %s137 = sphi 0, %s137
      %s139 = sphi 0, %s137
      %s140 = sphi 0, %s139
      %s154 = sphi 0, %s140
      %s162 = sphi 0, %s164
      %s165 = sphi 0, %s162
      %s166 = sphi 0, %s165
      %s182 = sphi 0, %s166
      %s190 = sphi 0, %s192
      %s193 = sphi 0, %s190
      %s194 = sphi 0, %s193
      %s210 = sphi 0, %s194
    $region4: #{tpu_custom_call.1} parent=1 // loop_header_branch
      %22 = sbr.rel (%p20) target = $region8
    $region5: #{tpu_custom_call.1} parent=1 // loop_body
      %s24 = ssub.s32 %s19, 1
      %s25 = ssub.s32 %s19, 2
      %s32 = sadd.s32 1, %s27
      %p33 = scmp.ge.s32.totalorder %s32, 1
      %s34 = scalar_select %p33, 0, %s32
      %s35 = sadd.s32 1, %s26
      %s36 = scalar_select %p33, %s35, %s26
      %p37 = scmp.ge.s32.totalorder %s36, 2
      %s38 = scalar_select %p37, 0, %s36
      %s39 = ssub.s32 %s26, %s38
      %s40 = ssub.s32 %s27, %s34
      %s41 = sor.u32 %s39, %s40
      %p42 = scmp.eq.s32.totalorder %s41, 0
      %s44 = sadd.s32 %s43, 1
      %s45 = scalar_select %p42, %s43, %s44
      %p48 = pneg %p42
      %p49 = scmp.eq.s32.totalorder %s19, 1
      %p50 = por %p48, %p49
      %p51 = scmp.ne.s32.totalorder %s43, %s46
      %p52 = scmp.eq.s32.totalorder %s19, 0
      %p53 = por %p51, %p52
      %p54 = scmp.ne.s32.totalorder %s43, %s46
      %p55 = scmp.eq.s32.totalorder %s24, 1
      %p56 = por %p54, %p55
      %p57 = scmp.ne.s32.totalorder %s46, %s47
      %p58 = scmp.eq.s32.totalorder %s24, 0
      %p59 = por %p57, %p58
      %p60 = scmp.ne.s32.totalorder %s46, %s47
      %p61 = scmp.eq.s32.totalorder %s25, 1
      %p62 = por %p60, %p61
      %p64 = scmp.ne.s32.totalorder %s47, %s63
      %p65 = scmp.eq.s32.totalorder %s25, 0
      %p66 = por %p64, %p65
      %s67 = ssub.s32 %s26, %s38
      %s68 = ssub.s32 %s27, %s34
      %s69 = sor.u32 %s67, %s68
      %p70 = scmp.eq.s32.totalorder %s69, 0
      %s72 = sadd.s32 %s71, 1
      %s73 = scalar_select %p70, %s71, %s72
      %p76 = pneg %p70
      %p77 = scmp.eq.s32.totalorder %s19, 1
      %p78 = por %p76, %p77
      %p79 = scmp.ne.s32.totalorder %s71, %s74
      %p80 = scmp.eq.s32.totalorder %s19, 0
      %p81 = por %p79, %p80
      %p82 = scmp.ne.s32.totalorder %s71, %s74
      %p83 = scmp.eq.s32.totalorder %s24, 1
      %p84 = por %p82, %p83
      %p85 = scmp.ne.s32.totalorder %s74, %s75
      %p86 = scmp.eq.s32.totalorder %s24, 0
      %p87 = por %p85, %p86
      %p88 = scmp.ne.s32.totalorder %s74, %s75
      %p89 = scmp.eq.s32.totalorder %s25, 1
      %p90 = por %p88, %p89
      %p92 = scmp.ne.s32.totalorder %s75, %s91
      %p93 = scmp.eq.s32.totalorder %s25, 0
      %p94 = por %p92, %p93
      %s96 = sadd.s32 %s95, 1
      %p99 = scmp.eq.s32.totalorder %s19, 1
      %p100 = scmp.ne.s32.totalorder %s95, %s97
      %p101 = scmp.eq.s32.totalorder %s19, 0
      %p102 = por %p100, %p101
      %p103 = scmp.ne.s32.totalorder %s95, %s97
      %p104 = scmp.eq.s32.totalorder %s24, 1
      %p105 = por %p103, %p104
      %p106 = scmp.ne.s32.totalorder %s97, %s98
      %p107 = scmp.eq.s32.totalorder %s24, 0
      %p108 = por %p106, %p107
      %p109 = scmp.ne.s32.totalorder %s97, %s98
      %p110 = scmp.eq.s32.totalorder %s25, 1
      %p111 = por %p109, %p110
      %p113 = scmp.ne.s32.totalorder %s98, %s112
      %p114 = scmp.eq.s32.totalorder %s25, 0
      %p115 = por %p113, %p114
      %s117 = sadd.s32 %s116, 1
      %p120 = scmp.eq.s32.totalorder %s19, 1
      %p121 = scmp.ne.s32.totalorder %s116, %s118
      %p122 = scmp.eq.s32.totalorder %s19, 0
      %p123 = por %p121, %p122
      %p124 = scmp.ne.s32.totalorder %s116, %s118
      %p125 = scmp.eq.s32.totalorder %s24, 1
      %p126 = por %p124, %p125
      %p127 = scmp.ne.s32.totalorder %s118, %s119
      %p128 = scmp.eq.s32.totalorder %s24, 0
      %p129 = por %p127, %p128
      %p130 = scmp.ne.s32.totalorder %s118, %s119
      %p131 = scmp.eq.s32.totalorder %s25, 1
      %p132 = por %p130, %p131
      %p134 = scmp.ne.s32.totalorder %s119, %s133
      %p135 = scmp.eq.s32.totalorder %s25, 0
      %p136 = por %p134, %p135
      %s138 = sadd.s32 %s137, 1
      %p141 = scmp.eq.s32.totalorder %s19, 1
      %p142 = scmp.ne.s32.totalorder %s137, %s139
      %p143 = scmp.eq.s32.totalorder %s19, 0
      %p144 = por %p142, %p143
      %p145 = scmp.ne.s32.totalorder %s137, %s139
      %p146 = scmp.eq.s32.totalorder %s24, 1
      %p147 = por %p145, %p146
      %p148 = scmp.ne.s32.totalorder %s139, %s140
      %p149 = scmp.eq.s32.totalorder %s24, 0
      %p150 = por %p148, %p149
      %p151 = scmp.ne.s32.totalorder %s139, %s140
      %p152 = scmp.eq.s32.totalorder %s25, 1
      %p153 = por %p151, %p152
      %p155 = scmp.ne.s32.totalorder %s140, %s154
      %p156 = scmp.eq.s32.totalorder %s25, 0
      %p157 = por %p155, %p156
      %s158 = ssub.s32 %s26, %s38
      %s159 = ssub.s32 %s27, %s34
      %s160 = sor.u32 %s158, %s159
      %p161 = scmp.eq.s32.totalorder %s160, 0
      %s163 = sadd.s32 %s162, 1
      %s164 = scalar_select %p161, %s162, %s163
      %p167 = pneg %p161
      %p168 = scmp.eq.s32.totalorder %s19, 1
      %p169 = por %p167, %p168
      %p170 = scmp.ne.s32.totalorder %s162, %s165
      %p171 = scmp.eq.s32.totalorder %s19, 0
      %p172 = por %p170, %p171
      %p173 = scmp.ne.s32.totalorder %s162, %s165
      %p174 = scmp.eq.s32.totalorder %s24, 1
      %p175 = por %p173, %p174
      %p176 = scmp.ne.s32.totalorder %s165, %s166
      %p177 = scmp.eq.s32.totalorder %s24, 0
      %p178 = por %p176, %p177
      %p179 = scmp.ne.s32.totalorder %s165, %s166
      %p180 = scmp.eq.s32.totalorder %s25, 1
      %p181 = por %p179, %p180
      %p183 = scmp.ne.s32.totalorder %s166, %s182
      %p184 = scmp.eq.s32.totalorder %s25, 0
      %p185 = por %p183, %p184
      %s186 = ssub.s32 %s26, %s38
      %s187 = ssub.s32 %s27, %s34
      %s188 = sor.u32 %s186, %s187
      %p189 = scmp.eq.s32.totalorder %s188, 0
      %s191 = sadd.s32 %s190, 1
      %s192 = scalar_select %p189, %s190, %s191
      %p195 = pneg %p189
      %p196 = scmp.eq.s32.totalorder %s19, 1
      %p197 = por %p195, %p196
      %p198 = scmp.ne.s32.totalorder %s190, %s193
      %p199 = scmp.eq.s32.totalorder %s19, 0
      %p200 = por %p198, %p199
      %p201 = scmp.ne.s32.totalorder %s190, %s193
      %p202 = scmp.eq.s32.totalorder %s24, 1
      %p203 = por %p201, %p202
      %p204 = scmp.ne.s32.totalorder %s193, %s194
      %p205 = scmp.eq.s32.totalorder %s24, 0
      %p206 = por %p204, %p205
      %p207 = scmp.ne.s32.totalorder %s193, %s194
      %p208 = scmp.eq.s32.totalorder %s25, 1
      %p209 = por %p207, %p208
      %p211 = scmp.ne.s32.totalorder %s194, %s210
      %p212 = scmp.eq.s32.totalorder %s25, 0
      %p213 = por %p211, %p212
      %p214 = scmp.le.s32.totalorder 1, %s19
      %p215 = scmp.lt.s32.totalorder %s19, 3
      %p216 = pnand %p214, %p215
      %p217 = pneg %p216
      // Predicated region
      $region9: #{tpu_custom_call.1} parent=5 // pred_check
        _
      $region10: #{tpu_custom_call.1} parent=5 // pred_check_branch
        %219 = sbr.rel (%p216) target = $region12
      $region11: #{tpu_custom_call.1} parent=5 // pred_region
        %s220 = ssub.s32 %s19, 1
        // Predicated region
        $region13: #{tpu_custom_call.1} parent=11 // pred_check
          %p221 = pneg %p108
        $region14: #{tpu_custom_call.1} parent=11 // pred_check_branch
          %223 = sbr.rel (%p221) target = $region16
        $region15: #{tpu_custom_call.1} parent=11 // pred_region
          _
        $region16: #{tpu_custom_call.1} parent=11 // pred_fallthru
          _
        // Predicated region
        $region17: #{tpu_custom_call.1} parent=11 // pred_check
          %p224 = pneg %p129
        $region18: #{tpu_custom_call.1} parent=11 // pred_check_branch
          %226 = sbr.rel (%p224) target = $region20
        $region19: #{tpu_custom_call.1} parent=11 // pred_region
          _
        $region20: #{tpu_custom_call.1} parent=11 // pred_fallthru
          _
        // Predicated region
        $region21: #{tpu_custom_call.1} parent=11 // pred_check
          %p227 = pneg %p150
        $region22: #{tpu_custom_call.1} parent=11 // pred_check_branch
          %229 = sbr.rel (%p227) target = $region24
        $region23: #{tpu_custom_call.1} parent=11 // pred_region
          _
        $region24: #{tpu_custom_call.1} parent=11 // pred_fallthru
          _
      $region12: #{tpu_custom_call.1} parent=5 // pred_fallthru
        _
      %p230 = scmp.lt.s32.totalorder %s19, 2
      // Predicated region
      $region25: #{tpu_custom_call.1} parent=5 // pred_check
        %p231 = pneg %p230
      $region26: #{tpu_custom_call.1} parent=5 // pred_check_branch
        %233 = sbr.rel (%p231) target = $region28
      $region27: #{tpu_custom_call.1} parent=5 // pred_region
        // Predicated region
        $region29: #{tpu_custom_call.1} parent=27 // pred_check
          %p234 = pneg %p53
        $region30: #{tpu_custom_call.1} parent=27 // pred_check_branch
          %236 = sbr.rel (%p234) target = $region32
        $region31: #{tpu_custom_call.1} parent=27 // pred_region
          %p237 = scmp.lt.s32.totalorder %s26, 1
          %s238 = scalar_select %p237, %s26, 1
          %p239 = scmp.lt.s32.totalorder %s27, 0
          %s240 = scalar_select %p239, %s27, 0
          %s241 = smul.addr %s238, 2
          %s242 = sadd.s32 %s240, %s241
          %s243 = smul.addr %s242, 8
          %s244 = scalar_lea.vmem %s0, %s243
        $region32: #{tpu_custom_call.1} parent=27 // pred_fallthru
          _
        // Predicated region
        $region33: #{tpu_custom_call.1} parent=27 // pred_check
          %p245 = pneg %p81
        $region34: #{tpu_custom_call.1} parent=27 // pred_check_branch
          %247 = sbr.rel (%p245) target = $region36
        $region35: #{tpu_custom_call.1} parent=27 // pred_region
          %p248 = scmp.lt.s32.totalorder %s26, 1
          %s249 = scalar_select %p248, %s26, 1
          %p250 = scmp.lt.s32.totalorder %s27, 0
          %s251 = scalar_select %p250, %s27, 0
          %s252 = smul.addr %s249, 2
          %s253 = sadd.s32 %s251, %s252
          %s254 = smul.addr %s253, 8
          %s255 = scalar_lea.vmem %s1, %s254
        $region36: #{tpu_custom_call.1} parent=27 // pred_fallthru
          _
      $region28: #{tpu_custom_call.1} parent=5 // pred_fallthru
        _
      %p256 = scmp.le.s32.totalorder 1, %s19
      %p257 = scmp.lt.s32.totalorder %s19, 3
      %p258 = pnand %p256, %p257
      %p259 = pneg %p258
      // Predicated region
      $region37: #{tpu_custom_call.1} parent=5 // pred_check
        _
      $region38: #{tpu_custom_call.1} parent=5 // pred_check_branch
        %261 = sbr.rel (%p258) target = $region40
      $region39: #{tpu_custom_call.1} parent=5 // pred_region
        %s262 = ssub.s32 %s19, 1
        %p263 = scmp.lt.s32.totalorder %s28, 1
        %s264 = scalar_select %p263, %s28, 1
        %p265 = scmp.lt.s32.totalorder %s29, 0
        %s266 = scalar_select %p265, %s29, 0
        %s267 = smul.addr %s264, 2
        %s268 = sadd.s32 %s266, %s267
        %s269 = smul.addr %s268, 8
        %s270 = scalar_lea.vmem %s0, %s269
        %p271 = pneg %p59
        %p272 = pneg %p56
        %p273 = scmp.lt.s32.totalorder %s28, 1
        %s274 = scalar_select %p273, %s28, 1
        %p275 = scmp.lt.s32.totalorder %s29, 0
        %s276 = scalar_select %p275, %s29, 0
        %s277 = smul.addr %s274, 2
        %s278 = sadd.s32 %s276, %s277
        %s279 = smul.addr %s278, 8
        %s280 = scalar_lea.vmem %s1, %s279
        %p281 = pneg %p87
        %p282 = pneg %p84
        %p283 = pneg %p108
        %p284 = pneg %p105
        %p285 = pneg %p129
        %p286 = pneg %p126
        %p287 = pneg %p150
        %p288 = pneg %p147
        %p289 = pneg %p178
        %p290 = pneg %p175
        %s291 = sand.u32 %s165, 1
        %s292 = scalar_lea.sflag [#allocation3], %s291
        %s293 = sand.u32 %s165, 1
        %s294 = smul.addr %s293, 8
        %s295 = scalar_lea.vmem [#allocation2], %s294
        %p296 = pneg %p206
        %p297 = pneg %p203
        %s298 = sand.u32 %s193, 1
        %s299 = scalar_lea.sflag [#allocation5], %s298
        %s300 = sand.u32 %s193, 1
        %s301 = smul.addr %s300, 8
        %s302 = scalar_lea.vmem [#allocation4], %s301
        %p303 = scmp.lt.s32.totalorder %s28, 1
        %s304 = scalar_select %p303, %s28, 1
        %p305 = scmp.lt.s32.totalorder %s29, 0
        %s306 = scalar_select %p305, %s29, 0
        %s307 = smul.addr %s304, 2
        %s308 = sadd.s32 %s306, %s307
        %s309 = smul.addr %s308, 8
        %s310 = scalar_lea.vmem %s0, %s309
        %p311 = scmp.lt.s32.totalorder %s28, 1
        %s312 = scalar_select %p311, %s28, 1
        %p313 = scmp.lt.s32.totalorder %s29, 0
        %s314 = scalar_select %p313, %s29, 0
        %s315 = smul.addr %s312, 2
        %s316 = sadd.s32 %s314, %s315
        %s317 = smul.addr %s316, 8
        %s318 = scalar_lea.vmem %s1, %s317
        %v320 = vld [vmem:[%s310] sm:$0xff]
        %v321 = vld [vmem:[%s310 + $0x8] sm:$0xff]
        %v322 = vpack.c.bf16 %v321, %v320
        %v323 = vld [vmem:[%s318] sm:$0xff]
        %v324 = vld [vmem:[%s318 + $0x8] sm:$0xff]
        %v325 = vpack.c.bf16 %v324, %v323
        %v326 = vld [vmem:[%s2] sm:$0xf]
        %v327 = vld [vmem:[%s2 + $0x4] sm:$0xf]
        %v328 = vld [vmem:[%s2 + $0x8] sm:$0xf]
        %v329 = vld [vmem:[%s2 + $0xc] sm:$0xf]
        %v330 = vld [vmem:[%s3] sm:$0xf]
        %v331 = vld [vmem:[%s3 + $0x4] sm:$0xf]
        %v332 = vld [vmem:[%s3 + $0x8] sm:$0xf]
        %v333 = vld [vmem:[%s3 + $0xc] sm:$0xf]
        %v338 = vunpack.c.l.b16 %v330
        %v339 = vunpack.c.l.b16 %v331
        %v340 = vunpack.c.l.b16 %v332
        %v341 = vunpack.c.l.b16 %v333
        %v342 = vpack.c.b16 %v339, %v338
        %v343 = vpack.c.b16 %v341, %v340
        %vm344 = vcmask 130048
        %v346 = vsel %vm344, %v342, 0
        %v349 = vsel %vm344, %v343, 0
        %351 = vmatpush.bf16.msra.mxu0 0
        %352 = vmatpush.bf16.msra.mxu0 0
        %353 = vmatpush.bf16.msra.mxu0 0
        %354 = vmatpush.bf16.msra.mxu0 0
        %355 = vmatpush.bf16.msra.mxu0 0
        %356 = vmatpush.bf16.msra.mxu0 0
        %357 = vmatpush.bf16.msra.mxu0 0
        %358 = vmatpush.bf16.msra.mxu0 %v325
        %359 = vmatmul.bf16.gmra.mxu0 %v346
        %v360 = vpop.f32.mrf.mxu0
        %v361 = vadd.f32 0.0, %v360
        %v362 = vpop.f32.mrf.mxu0
        %v363 = vadd.f32 0.0, %v362
        %364 = vmatmul.bf16.gmra.mxu0 %v349
        %v365 = vpop.f32.mrf.mxu0
        %v366 = vadd.f32 0.0, %v365
        %v367 = vpop.f32.mrf.mxu0
        %v368 = vadd.f32 0.0, %v367
        %369 = vdwg.mxu0
        %v374 = vunpack.c.l.b16 %v326
        %v375 = vunpack.c.l.b16 %v327
        %v376 = vunpack.c.l.b16 %v328
        %v377 = vunpack.c.l.b16 %v329
        %v378 = vpack.c.b16 %v375, %v374
        %v379 = vpack.c.b16 %v377, %v376
        %v381 = vsel %vm344, %v378, 0
        %v384 = vsel %vm344, %v379, 0
        %386 = vmatpush.bf16.msra.mxu0 0
        %387 = vmatpush.bf16.msra.mxu0 0
        %388 = vmatpush.bf16.msra.mxu0 0
        %389 = vmatpush.bf16.msra.mxu0 0
        %390 = vmatpush.bf16.msra.mxu0 0
        %391 = vmatpush.bf16.msra.mxu0 0
        %392 = vmatpush.bf16.msra.mxu0 0
        %393 = vmatpush.bf16.msra.mxu0 %v322
        %394 = vmatmul.bf16.gmra.mxu0 %v381
        %v395 = vpop.f32.mrf.mxu0
        %v396 = vadd.f32 %v361, %v395
        %v397 = vpop.f32.mrf.mxu0
        %v398 = vadd.f32 %v363, %v397
        %399 = vmatmul.bf16.gmra.mxu0 %v384
        %v400 = vpop.f32.mrf.mxu0
        %v401 = vadd.f32 %v366, %v400
        %v402 = vpop.f32.mrf.mxu0
        %v403 = vadd.f32 %v368, %v402
        %404 = vdwg.mxu0
        %v405 = vld [vmem:[%s4] sm:$0xff]
        %v406 = vld [vmem:[%s4 + $0x8] sm:$0xff]
        %v407 = vld [vmem:[%s4 + $0x10] sm:$0xff]
        %v408 = vld [vmem:[%s4 + $0x18] sm:$0xff]
        %410 = vset.pattern.permute.xlu0 0
        %411 = vperm.xlu0 %410, %v405
        %v412 = vpop.permute.xlu0 %411
        %415 = vset.pattern.permute.xlu0 0
        %416 = vperm.xlu0 %415, %v406
        %v417 = vpop.permute.xlu0 %416
        %420 = vset.pattern.permute.xlu0 0
        %421 = vperm.xlu0 %420, %v407
        %v422 = vpop.permute.xlu0 %421
        %425 = vset.pattern.permute.xlu0 0
        %426 = vperm.xlu0 %425, %v408
        %v427 = vpop.permute.xlu0 %426
        %v429 = vadd.f32 %v396, %v412
        %v430 = vadd.f32 %v398, %v417
        %v431 = vadd.f32 %v401, %v422
        %v432 = vadd.f32 %v403, %v427
        %v433 = vpack.c.bf16 %v429, %v429
        %v434 = vpack.c.bf16 %v430, %v430
        %vm435 = vcmask 125952
        %436 = vst.msk [vmem:[%s295] sm:$0xf] %vm435, %v433
        %437 = vst.msk [vmem:[%s295 + $0x4] sm:$0xf] %vm435, %v434
        %v438 = vpack.c.bf16 %v431, %v431
        %v439 = vpack.c.bf16 %v432, %v432
        %440 = vst.msk [vmem:[%s302] sm:$0xf] %vm435, %v438
        %441 = vst.msk [vmem:[%s302 + $0x4] sm:$0xf] %vm435, %v439
        %s442 = sand.u32 %s165, 1
        %s443 = scalar_lea.sflag [#allocation3], %s442
        %s444 = sand.u32 %s165, 1
        %s445 = smul.addr %s444, 8
        %s446 = scalar_lea.vmem [#allocation2], %s445
        %s447 = sand.u32 %s193, 1
        %s448 = scalar_lea.sflag [#allocation5], %s447
        %s449 = sand.u32 %s193, 1
        %s450 = smul.addr %s449, 8
        %s451 = scalar_lea.vmem [#allocation4], %s450
        // Predicated region
        $region41: #{tpu_custom_call.1} parent=39 // pred_check
          %p452 = pneg %p175
        $region42: #{tpu_custom_call.1} parent=39 // pred_check_branch
          %454 = sbr.rel (%p452) target = $region44
        $region43: #{tpu_custom_call.1} parent=39 // pred_region
          %456 = vsyncadd %s443, 0
          %s457 = smul.addr %s28, 2
          %s458 = sadd.s32 %s29, %s457
          %s459 = smul.addr %s458, 4
          %s460 = scalar_lea.hbm %s5, %s459
          %s461 = sshll.u32 %s446, 4
          %s462 = int_to_ptr.vmem [resolvable:$true] %s461
          %s463 = sshll.u32 %s460, 4
          %s464 = int_to_ptr.hbm [resolvable:$true] %s463
          %469 = dma.vmem_to_hbm [thread:$0]  %s462, 128, %s464, %s443, 64, 64, 4
        $region44: #{tpu_custom_call.1} parent=39 // pred_fallthru
          _
        // Predicated region
        $region45: #{tpu_custom_call.1} parent=39 // pred_check
          %p470 = pneg %p203
        $region46: #{tpu_custom_call.1} parent=39 // pred_check_branch
          %472 = sbr.rel (%p470) target = $region48
        $region47: #{tpu_custom_call.1} parent=39 // pred_region
          %474 = vsyncadd %s448, 0
          %s475 = smul.addr %s28, 2
          %s476 = sadd.s32 %s29, %s475
          %s477 = smul.addr %s476, 4
          %s478 = scalar_lea.hbm %s6, %s477
          %s479 = sshll.u32 %s451, 4
          %s480 = int_to_ptr.vmem [resolvable:$true] %s479
          %s481 = sshll.u32 %s478, 4
          %s482 = int_to_ptr.hbm [resolvable:$true] %s481
          %487 = dma.vmem_to_hbm [thread:$0]  %s480, 128, %s482, %s448, 64, 64, 4
        $region48: #{tpu_custom_call.1} parent=39 // pred_fallthru
          _
      $region40: #{tpu_custom_call.1} parent=5 // pred_fallthru
        _
      %p488 = scmp.le.s32.totalorder 2, %s19
      // Predicated region
      $region49: #{tpu_custom_call.1} parent=5 // pred_check
        %p489 = pneg %p488
      $region50: #{tpu_custom_call.1} parent=5 // pred_check_branch
        %491 = sbr.rel (%p489) target = $region52
      $region51: #{tpu_custom_call.1} parent=5 // pred_region
        %s492 = ssub.s32 %s19, 2
        // Predicated region
        $region53: #{tpu_custom_call.1} parent=51 // pred_check
          %p493 = pneg %p181
        $region54: #{tpu_custom_call.1} parent=51 // pred_check_branch
          %495 = sbr.rel (%p493) target = $region56
        $region55: #{tpu_custom_call.1} parent=51 // pred_region
          %s496 = sand.u32 %s166, 1
          %s497 = scalar_lea.sflag [#allocation3], %s496
          %s498 = sand.u32 %s166, 1
          %s499 = smul.addr %s498, 8
          %s500 = scalar_lea.vmem [#allocation2], %s499
          %502 = dma.done %s497, 128
        $region56: #{tpu_custom_call.1} parent=51 // pred_fallthru
          _
        // Predicated region
        $region57: #{tpu_custom_call.1} parent=51 // pred_check
          %p503 = pneg %p209
        $region58: #{tpu_custom_call.1} parent=51 // pred_check_branch
          %505 = sbr.rel (%p503) target = $region60
        $region59: #{tpu_custom_call.1} parent=51 // pred_region
          %s506 = sand.u32 %s194, 1
          %s507 = scalar_lea.sflag [#allocation5], %s506
          %s508 = sand.u32 %s194, 1
          %s509 = smul.addr %s508, 8
          %s510 = scalar_lea.vmem [#allocation4], %s509
          %512 = dma.done %s507, 128
        $region60: #{tpu_custom_call.1} parent=51 // pred_fallthru
          _
      $region52: #{tpu_custom_call.1} parent=5 // pred_fallthru
        _
    $region6: #{tpu_custom_call.1} parent=1 // loop_footer
      %s23 = sadd.s32 1, %s19
    $region7: #{tpu_custom_call.1} parent=1 // loop_footer_branch
      %18 = sbr.rel target = $region3
    $region8: #{tpu_custom_call.1} parent=1 // loop_exit
      _
    %513 = vsyncpa [#allocation3], 1
    %s514 = scalar_lea.sflag [#allocation3], 1
    %515 = vsyncpa %s514, 1
    %516 = vsyncpa [#allocation5], 1
    %s517 = scalar_lea.sflag [#allocation5], 1
    %518 = vsyncpa %s517, 1

</llo_original>
